<compile_context>
chip_gen: v7x
topology: tpu7x:2x2x1
jax: 0.10.0
libtpu: 0.0.40
codegen_flags: <defaults>
</compile_context>

<pallas_src>
import jax
import jax.numpy as jnp
from jax.experimental import pallas as pl
from jax.experimental.pallas import tpu as pltpu


def _eq_kernel(x_ref, o_ref):
    # torch.eq(a, b) where a and b alias the same slab of V. Comparing the
    # slab with itself is elementwise-exact (NaN != NaN in both frameworks).
    x = x_ref[...]
    o_ref[...] = (x == x).astype(jnp.int8)


def attention_mechanism_forward(V, h_t):
    """Mirrors AttentionMechanism.forward(V, h_t).

    V:   (H', W', C, B) float32
    h_t: unused by the reference forward (kept for signature fidelity)

    Returns the int8 equality map of shape (C, B) — the result of
    torch.eq(V_reshaped[0, :, :], V[0, 0, :, :]) from the reference code.
    """
    Hp, Wp, C, B = V.shape

    # Layout glue (wrapper-side, no kernel cost):
    # V.reshape(H'*W', C, B)[0]  ==  V[0, 0]  — one (C, B) slab, presented
    # lane-dense as (1, C*B) so stores are not masked on a last-dim of 2.
    slab = V[0, 0].reshape(1, C * B)
    rows, cols = slab.shape

    # Full-array block at toy size (exempt from the (8,128) tiling rule).
    # TODO(synk): if C*B scales to real sizes, tile `rows` in 512–1024 chunks
    # (lane axis a multiple of 128) and raise vmem_limit_bytes with headroom
    # for v7x's smaller (64 MiB) VMEM.
    tile_rows = rows
    grid = (rows // tile_rows,)

    eq_flat = pl.pallas_call(
        _eq_kernel,
        out_shape=jax.ShapeDtypeStruct((rows, cols), jnp.int8),
        grid=grid,
        in_specs=[pl.BlockSpec((tile_rows, cols), lambda i: (i, 0))],
        out_specs=pl.BlockSpec((tile_rows, cols), lambda i: (i, 0)),
        compiler_params=pltpu.CompilerParams(
            dimension_semantics=("parallel",)),
    )(slab)

    # TODO(synk): the reference forward only prints and returns None; we
    # return the equality map so there is a device result to block on.
    return eq_flat.reshape(C, B)


if __name__ == "__main__":
    key = jax.random.PRNGKey(0)
    k_v, k_h = jax.random.split(key)

    # Small shapes consistent with the module: H'=4, W'=4, C=4, batch=2.
    Hp, Wp, C, B = 4, 4, 4, 2
    V = jax.random.normal(k_v, (Hp, Wp, C, B), dtype=jnp.float32)
    h_t = jax.random.normal(k_h, (B, 32), dtype=jnp.float32)  # unused, per reference

    eq = attention_mechanism_forward(V, h_t)
    eq = jax.block_until_ready(eq)

    # The reshape preserves data, so the equality map must be all ones,
    # matching torch.eq(...) being all True in the reference.
    assert eq.shape == (C, B)
    assert eq.dtype == jnp.int8
    assert bool(jnp.all(eq == 1))

    print("KERNEL_OK")
</pallas_src>

<mosaic_0001>
module attributes {stable_mosaic.version = 11 : i64} {
  func.func @_eq_kernel(%arg0: i32, %arg1: memref<1x8xf32, #tpu.memory_space<vmem>>, %arg2: memref<1x8xi8, #tpu.memory_space<vmem>>) attributes {dimension_semantics = [#tpu.dimension_semantics<parallel>], iteration_bounds = array<i64: 1>, scalar_prefetch = 0 : i64, scratch_operands = 0 : i64, tpu.core_type = #tpu.core_type<tc>, window_params = [{transform_indices = @transform_0, window_bounds = array<i64: 1, 8>}, {transform_indices = @transform_1, window_bounds = array<i64: 1, 8>}]} {
    %c0 = arith.constant 0 : index
    %c0_0 = arith.constant 0 : index
    %0 = vector.load %arg1[%c0, %c0_0] : memref<1x8xf32, #tpu.memory_space<vmem>>, vector<1x8xf32>
    %1 = arith.cmpf oeq, %0, %0 : vector<1x8xf32>
    %2 = arith.extui %1 : vector<1x8xi1> to vector<1x8xi8>
    %c0_1 = arith.constant 0 : index
    %c0_2 = arith.constant 0 : index
    %3 = vector.load %arg2[%c0_1, %c0_2] : memref<1x8xi8, #tpu.memory_space<vmem>>, vector<1x8xi8>
    tpu.vector_store %arg2[%c0_1, %c0_2], %2 {strides = array<i32>} : memref<1x8xi8, #tpu.memory_space<vmem>>, vector<1x8xi8>,
    return
  }
  func.func @transform_0(%arg0: i32) -> (i32, i32) {
    %c0_i32 = arith.constant 0 : i32
    %c0_i32_0 = arith.constant 0 : i32
    return %arg0, %c0_i32 : i32, i32
  }
  func.func @transform_1(%arg0: i32) -> (i32, i32) {
    %c0_i32 = arith.constant 0 : i32
    %c0_i32_0 = arith.constant 0 : i32
    return %arg0, %c0_i32 : i32, i32
  }
}

</mosaic_0001>

<llo_original>
// kernel: tpu_custom_call.1
$region0: #{tpu_custom_call.1}
  #allocation0 [shape = 'u32[]', space=smem, size = 0x4, offset = 0x4, fixed_abs, tag = 'smem constant byte address 0x4 - core index']
  #allocation1 [shape = 'u32[144,128]{1,0:T(1,128)}', space=vmem, size = 0x12000, scoped, tag = 'internal scratch']
  %s0 = inlined_call_operand.hbm [shape: f32[1,8], index: 0, kind: input, shape index: {}]
  %s1 = inlined_call_operand.hbm [shape: s8[1,8], index: 1, kind: output, shape index: {}]
  %s2 = sld [smem:[#allocation0]]
  $region18: #{tpu_custom_call.1} parent=0
    _
  %s4 = ssub.s32 1, %s2
  %s5 = scalar_select 0, %s4, %s2
  $region1: #{tpu_custom_call.1} parent=0
    #allocation2 [shape = 'u8[512]{0}', space=vmem, size = 0x400, scoped, tag = 'input window, operand 0, single buffered']
    #allocation3 [shape = 's32[1]{0}', space=sflag, size = 0x4, scoped, tag = 'scoped memory for tpu_custom_call.1']
    #allocation4 [shape = 's32[1]{0}', space=sflag, size = 0x4, scoped, tag = 'scoped memory for tpu_custom_call.1']
    #allocation5 [shape = 'u8[512]{0}', space=vmem, size = 0x400, scoped, tag = 'output window, operand 0, single buffered']
    %6 = vsyncpa [#allocation3], 0
    %7 = vsyncpa [#allocation4], 0
    // Predicated region
    $region2: #{tpu_custom_call.1} parent=1 // pred_check
      _
    $region3: #{tpu_custom_call.1} parent=1 // pred_check_branch
      %9 = sbr.rel (0) target = $region5
    $region4: #{tpu_custom_call.1} parent=1 // pred_region
      %s11 = ssub.s32 16, 16
      %12 = vsyncadd [#allocation3], %s11
      %s14 = sshll.u32 [#allocation2], 4
      %s15 = int_to_ptr.vmem [resolvable:$true] %s14
      %17 = dma.hbm_to_vmem [thread:$0]  %s0, 16, %s15, [#allocation3]
    $region5: #{tpu_custom_call.1} parent=1 // pred_fallthru
      _
    // Predicated region
    $region6: #{tpu_custom_call.1} parent=1 // pred_check
      _
    $region7: #{tpu_custom_call.1} parent=1 // pred_check_branch
      %19 = sbr.rel (0) target = $region9
    $region8: #{tpu_custom_call.1} parent=1 // pred_region
      %20 = dma.done [#allocation3], 16
    $region9: #{tpu_custom_call.1} parent=1 // pred_fallthru
      _
    %v23 = vld [vmem:[#allocation2] sm:$0x1]
    %vm24 = vcmp.eq.f32.partialorder %v23, %v23
    %v25 = vsel %vm24, 1, 0
    %v26 = vpack.c.b16 %v25, %v25
    %v27 = vpack.c.b8 %v26, %v26
    %vm28 = vnez %v27
    %v29 = vsel %vm28, 16843009, 0
    %vm30 = vcmask 57344
    %vm31 = vsmask.f32 0
    %vm32 = vmand %vm30, %vm31
    %v33 = vld [vmem:[#allocation5] sm:$0x1]
    %v34 = vsel %vm32, %v29, %v33
    %35 = vst [vmem:[#allocation5] sm:$0x1] %v34
    // Predicated region
    $region10: #{tpu_custom_call.1} parent=1 // pred_check
      _
    $region11: #{tpu_custom_call.1} parent=1 // pred_check_branch
      %37 = sbr.rel (0) target = $region13
    $region12: #{tpu_custom_call.1} parent=1 // pred_region
      %s39 = ssub.s32 16, 16
      %40 = vsyncadd [#allocation4], %s39
      %s42 = sshll.u32 [#allocation5], 4
      %s43 = int_to_ptr.vmem [resolvable:$true] %s42
      %45 = dma.vmem_to_hbm [thread:$0]  %s43, 16, %s1, [#allocation4]
    $region13: #{tpu_custom_call.1} parent=1 // pred_fallthru
      _
    // Predicated region
    $region14: #{tpu_custom_call.1} parent=1 // pred_check
      _
    $region15: #{tpu_custom_call.1} parent=1 // pred_check_branch
      %47 = sbr.rel (0) target = $region17
    $region16: #{tpu_custom_call.1} parent=1 // pred_region
      %48 = dma.done [#allocation4], 16
    $region17: #{tpu_custom_call.1} parent=1 // pred_fallthru
      _
    %49 = vsyncpa [#allocation3], 1
    %50 = vsyncpa [#allocation4], 1

</llo_original>
